<compile_context>
chip_gen: v5e
topology: v5e:2x2
jax: 0.10.0
libtpu: 0.0.40
codegen_flags: <defaults>
</compile_context>

<pallas_src>
import jax
import jax.numpy as jnp
from jax import lax
from jax.experimental import pallas as pl
from jax.experimental.pallas import tpu as pltpu


def mlp_kernel(x_ref, w1_ref, b1_ref, w2_ref, b2_ref,
               w3_ref, b3_ref, w4_ref, b4_ref, o_ref):
    """Transposed-activation MLP tile.

    x_ref  : (TM, 8)  f32 batch tile (rows = batch samples)
    w*_ref : (out,in) bf16 weights, VMEM-resident across grid steps
    b*_ref : (out, 1) f32 biases, broadcast along the lane (batch) axis
    o_ref  : (2, TM)  f32 lane-dense output tile
    """
    x = x_ref[...].astype(jnp.bfloat16)                      # (TM, 8)

    # Layer 1: contract on x's feature axis (w1 @ x^T) -- transpose is folded
    # into the MXU operand load, no XLU work, result is (64, TM).
    h = lax.dot_general(w1_ref[...], x,
                        dimension_numbers=(((1,), (1,)), ((), ())),
                        preferred_element_type=jnp.float32)
    h = jnp.maximum(h + b1_ref[...], 0.0).astype(jnp.bfloat16)

    h = jnp.dot(w2_ref[...], h, preferred_element_type=jnp.float32)
    h = jnp.maximum(h + b2_ref[...], 0.0).astype(jnp.bfloat16)

    h = jnp.dot(w3_ref[...], h, preferred_element_type=jnp.float32)
    h = jnp.maximum(h + b3_ref[...], 0.0).astype(jnp.bfloat16)

    out = jnp.dot(w4_ref[...], h, preferred_element_type=jnp.float32) + b4_ref[...]
    o_ref[...] = out.astype(o_ref.dtype)


def _pick_tile(B, tm_max):
    """Batch-tile size: full-array block for small B; otherwise a multiple of
    128 (lane-dense output block) chosen so the grid has an even number of
    steps (balanced split across v7x's two TensorCores)."""
    if B <= 512:
        return B                       # grid == 1, full-array blocks
    n = pl.cdiv(B, tm_max)
    if n % 2:
        n += 1                         # even grid -> megacore balance (v7x)
    return pl.cdiv(pl.cdiv(B, n), 128) * 128


def nn_input8_output2_forward(image, params, tm_max=4096):
    """Forward pass of NN_input8_output2.

    image : (B, C, H, W) with C*H*W == 8, or already (B, 8).
    params: dict w1..w4 (in, out), b1..b4 (1, out)  -- PyTorch-like layout.
    Returns (B, 2) float32.
    """
    B = image.shape[0]
    x = image.reshape(B, -1).astype(jnp.float32)   # == image.view(B, -1)
    assert x.shape[1] == 8

    # Pre-cast/transpose params in the wrapper (tiny + static):
    # weights (out, in) bf16, biases (out, 1) f32.
    w1t, b1 = params["w1"].T.astype(jnp.bfloat16), params["b1"].reshape(-1, 1)
    w2t, b2 = params["w2"].T.astype(jnp.bfloat16), params["b2"].reshape(-1, 1)
    w3t, b3 = params["w3"].T.astype(jnp.bfloat16), params["b3"].reshape(-1, 1)
    w4t, b4 = params["w4"].T.astype(jnp.bfloat16), params["b4"].reshape(-1, 1)

    tm = _pick_tile(B, tm_max)
    grid = (pl.cdiv(B, tm),)           # ragged last block handled by Pallas

    # Constant index_map -> parameters are DMA'd once and stay VMEM-resident.
    const_spec = lambda shape: pl.BlockSpec(shape, lambda i: (0, 0))

    flops_per_row = 2 * (8 * 64 + 64 * 64 + 64 * 16 + 16 * 2)            # 11328
    param_bytes = (2 * (8 * 64 + 64 * 64 + 64 * 16 + 16 * 2)             # bf16 W
                   + 4 * (64 + 64 + 16 + 2))                             # f32 b

    out_t = pl.pallas_call(
        mlp_kernel,
        out_shape=jax.ShapeDtypeStruct((2, B), jnp.float32),
        grid_spec=pl.GridSpec(
            grid=grid,
            in_specs=[
                pl.BlockSpec((tm, 8), lambda i: (i, 0)),          # batch tile
                const_spec(w1t.shape), const_spec(b1.shape),
                const_spec(w2t.shape), const_spec(b2.shape),
                const_spec(w3t.shape), const_spec(b3.shape),
                const_spec(w4t.shape), const_spec(b4.shape),
            ],
            out_specs=pl.BlockSpec((2, tm), lambda i: (0, i)),    # lane-dense
        ),
        compiler_params=pltpu.CompilerParams(
            dimension_semantics=("parallel",)),
        cost_estimate=pl.CostEstimate(
            flops=flops_per_row * B,
            transcendentals=0,
            bytes_accessed=40 * B + param_bytes),
    )(x, w1t, b1, w2t, b2, w3t, b3, w4t, b4)

    # (2, B) -> (B, 2) to match the PyTorch module's output layout.
    return out_t.T


def init_params(key):
    """Deterministic init mimicking nn.Linear (uniform(-1/sqrt(in), 1/sqrt(in)))."""
    dims = [(8, 64), (64, 64), (64, 16), (16, 2)]
    params = {}
    keys = jax.random.split(key, 2 * len(dims))
    for i, (fan_in, fan_out) in enumerate(dims):
        bound = 1.0 / (fan_in ** 0.5)
        params[f"w{i + 1}"] = jax.random.uniform(
            keys[2 * i], (fan_in, fan_out), minval=-bound, maxval=bound,
            dtype=jnp.float32)
        params[f"b{i + 1}"] = jax.random.uniform(
            keys[2 * i + 1], (1, fan_out), minval=-bound, maxval=bound,
            dtype=jnp.float32)
    return params


def reference_forward(image, params):
    x = image.reshape(image.shape[0], -1).astype(jnp.float32)
    h = jnp.maximum(x @ params["w1"] + params["b1"], 0.0)
    h = jnp.maximum(h @ params["w2"] + params["b2"], 0.0)
    h = jnp.maximum(h @ params["w3"] + params["b3"], 0.0)
    return h @ params["w4"] + params["b4"]


if __name__ == "__main__":
    key = jax.random.PRNGKey(0)
    k_img, k_par, k_big = jax.random.split(key, 3)

    params = init_params(k_par)

    # Small NCHW input whose flattened size is 8: (batch=4, C=2, H=2, W=2).
    image = jax.random.normal(k_img, (4, 2, 2, 2), dtype=jnp.float32)
    out = jax.block_until_ready(nn_input8_output2_forward(image, params))
    ref = reference_forward(image, params)
    assert out.shape == (4, 2)
    # bf16 matmul operands with f32 accumulation -> loosened tolerance.
    assert jnp.allclose(out, ref, atol=5e-2, rtol=5e-2)

    # Larger, non-tile-multiple batch: exercises grid>1, ragged last block,
    # and the even-grid (megacore-balanced) tile selection.
    big = jax.random.normal(k_big, (2500, 2, 2, 2), dtype=jnp.float32)
    out_big = jax.block_until_ready(
        nn_input8_output2_forward(big, params, tm_max=1024))
    ref_big = reference_forward(big, params)
    assert out_big.shape == (2500, 2)
    assert jnp.allclose(out_big, ref_big, atol=5e-2, rtol=5e-2)

    print("KERNEL_OK")
</pallas_src>

<mosaic_0001>
module attributes {stable_mosaic.version = 11 : i64} {
  func.func @mlp_kernel(%arg0: i32, %arg1: memref<4x8xf32, #tpu.memory_space<vmem>>, %arg2: memref<64x8xbf16, #tpu.memory_space<vmem>>, %arg3: memref<64x1xf32, #tpu.memory_space<vmem>>, %arg4: memref<64x64xbf16, #tpu.memory_space<vmem>>, %arg5: memref<64x1xf32, #tpu.memory_space<vmem>>, %arg6: memref<16x64xbf16, #tpu.memory_space<vmem>>, %arg7: memref<16x1xf32, #tpu.memory_space<vmem>>, %arg8: memref<2x16xbf16, #tpu.memory_space<vmem>>, %arg9: memref<2x1xf32, #tpu.memory_space<vmem>>, %arg10: memref<2x4xf32, #tpu.memory_space<vmem>>) attributes {dimension_semantics = [#tpu.dimension_semantics<parallel>], iteration_bounds = array<i64: 1>, scalar_prefetch = 0 : i64, scratch_operands = 0 : i64, tpu.core_type = #tpu.core_type<tc>, window_params = [{transform_indices = @transform_0, window_bounds = array<i64: 4, 8>}, {pipeline_mode = #tpu.pipeline_mode<synchronous>, transform_indices = @transform_1, window_bounds = array<i64: 64, 8>}, {pipeline_mode = #tpu.pipeline_mode<synchronous>, transform_indices = @transform_2, window_bounds = array<i64: 64, 1>}, {pipeline_mode = #tpu.pipeline_mode<synchronous>, transform_indices = @transform_3, window_bounds = array<i64: 64, 64>}, {pipeline_mode = #tpu.pipeline_mode<synchronous>, transform_indices = @transform_4, window_bounds = array<i64: 64, 1>}, {pipeline_mode = #tpu.pipeline_mode<synchronous>, transform_indices = @transform_5, window_bounds = array<i64: 16, 64>}, {pipeline_mode = #tpu.pipeline_mode<synchronous>, transform_indices = @transform_6, window_bounds = array<i64: 16, 1>}, {pipeline_mode = #tpu.pipeline_mode<synchronous>, transform_indices = @transform_7, window_bounds = array<i64: 2, 16>}, {pipeline_mode = #tpu.pipeline_mode<synchronous>, transform_indices = @transform_8, window_bounds = array<i64: 2, 1>}, {transform_indices = @transform_9, window_bounds = array<i64: 2, 4>}]} {
    %c0 = arith.constant 0 : index
    %c0_0 = arith.constant 0 : index
    %0 = vector.load %arg1[%c0, %c0_0] : memref<4x8xf32, #tpu.memory_space<vmem>>, vector<4x8xf32>
    %1 = arith.truncf %0 : vector<4x8xf32> to vector<4x8xbf16>
    %c0_1 = arith.constant 0 : index
    %c0_2 = arith.constant 0 : index
    %2 = vector.load %arg2[%c0_1, %c0_2] : memref<64x8xbf16, #tpu.memory_space<vmem>>, vector<64x8xbf16>
    %cst = arith.constant dense<0.000000e+00> : vector<64x4xf32>
    %3 = tpu.matmul %2, %1, %cst {dimension_numbers = #tpu.dot_dimension_numbers<[1], [1], [0], [0], [0, 0, 1, 0], [], []>} : vector<64x8xbf16>, vector<4x8xbf16>, vector<64x4xf32> -> vector<64x4xf32>
    %c0_3 = arith.constant 0 : index
    %c0_4 = arith.constant 0 : index
    %4 = vector.load %arg3[%c0_3, %c0_4] : memref<64x1xf32, #tpu.memory_space<vmem>>, vector<64x1xf32>
    %5 = vector.broadcast %4 : vector<64x1xf32> to vector<64x4xf32>
    %6 = arith.addf %3, %5 : vector<64x4xf32>
    %cst_5 = arith.constant 0.000000e+00 : f32
    %7 = vector.broadcast %cst_5 : f32 to vector<64x4xf32>
    %8 = arith.maximumf %6, %7 : vector<64x4xf32>
    %9 = arith.truncf %8 : vector<64x4xf32> to vector<64x4xbf16>
    %c0_6 = arith.constant 0 : index
    %c0_7 = arith.constant 0 : index
    %10 = vector.load %arg4[%c0_6, %c0_7] : memref<64x64xbf16, #tpu.memory_space<vmem>>, vector<64x64xbf16>
    %cst_8 = arith.constant dense<0.000000e+00> : vector<64x4xf32>
    %11 = tpu.matmul %10, %9, %cst_8 {dimension_numbers = #tpu.dot_dimension_numbers<[1], [0], [0], [1], [0, 0, 1, 1], [], []>} : vector<64x64xbf16>, vector<64x4xbf16>, vector<64x4xf32> -> vector<64x4xf32>
    %c0_9 = arith.constant 0 : index
    %c0_10 = arith.constant 0 : index
    %12 = vector.load %arg5[%c0_9, %c0_10] : memref<64x1xf32, #tpu.memory_space<vmem>>, vector<64x1xf32>
    %13 = vector.broadcast %12 : vector<64x1xf32> to vector<64x4xf32>
    %14 = arith.addf %11, %13 : vector<64x4xf32>
    %cst_11 = arith.constant 0.000000e+00 : f32
    %15 = vector.broadcast %cst_11 : f32 to vector<64x4xf32>
    %16 = arith.maximumf %14, %15 : vector<64x4xf32>
    %17 = arith.truncf %16 : vector<64x4xf32> to vector<64x4xbf16>
    %c0_12 = arith.constant 0 : index
    %c0_13 = arith.constant 0 : index
    %18 = vector.load %arg6[%c0_12, %c0_13] : memref<16x64xbf16, #tpu.memory_space<vmem>>, vector<16x64xbf16>
    %cst_14 = arith.constant dense<0.000000e+00> : vector<16x4xf32>
    %19 = tpu.matmul %18, %17, %cst_14 {dimension_numbers = #tpu.dot_dimension_numbers<[1], [0], [0], [1], [0, 0, 1, 1], [], []>} : vector<16x64xbf16>, vector<64x4xbf16>, vector<16x4xf32> -> vector<16x4xf32>
    %c0_15 = arith.constant 0 : index
    %c0_16 = arith.constant 0 : index
    %20 = vector.load %arg7[%c0_15, %c0_16] : memref<16x1xf32, #tpu.memory_space<vmem>>, vector<16x1xf32>
    %21 = vector.broadcast %20 : vector<16x1xf32> to vector<16x4xf32>
    %22 = arith.addf %19, %21 : vector<16x4xf32>
    %cst_17 = arith.constant 0.000000e+00 : f32
    %23 = vector.broadcast %cst_17 : f32 to vector<16x4xf32>
    %24 = arith.maximumf %22, %23 : vector<16x4xf32>
    %25 = arith.truncf %24 : vector<16x4xf32> to vector<16x4xbf16>
    %c0_18 = arith.constant 0 : index
    %c0_19 = arith.constant 0 : index
    %26 = vector.load %arg8[%c0_18, %c0_19] : memref<2x16xbf16, #tpu.memory_space<vmem>>, vector<2x16xbf16>
    %cst_20 = arith.constant dense<0.000000e+00> : vector<2x4xf32>
    %27 = tpu.matmul %26, %25, %cst_20 {dimension_numbers = #tpu.dot_dimension_numbers<[1], [0], [0], [1], [0, 0, 1, 1], [], []>} : vector<2x16xbf16>, vector<16x4xbf16>, vector<2x4xf32> -> vector<2x4xf32>
    %c0_21 = arith.constant 0 : index
    %c0_22 = arith.constant 0 : index
    %28 = vector.load %arg9[%c0_21, %c0_22] : memref<2x1xf32, #tpu.memory_space<vmem>>, vector<2x1xf32>
    %29 = vector.broadcast %28 : vector<2x1xf32> to vector<2x4xf32>
    %30 = arith.addf %27, %29 : vector<2x4xf32>
    %c0_23 = arith.constant 0 : index
    %c0_24 = arith.constant 0 : index
    %31 = vector.load %arg10[%c0_23, %c0_24] : memref<2x4xf32, #tpu.memory_space<vmem>>, vector<2x4xf32>
    tpu.vector_store %arg10[%c0_23, %c0_24], %30 {strides = array<i32>} : memref<2x4xf32, #tpu.memory_space<vmem>>, vector<2x4xf32>,
    return
  }
  func.func @transform_0(%arg0: i32) -> (i32, i32) {
    %c0_i32 = arith.constant 0 : i32
    %c0_i32_0 = arith.constant 0 : i32
    return %arg0, %c0_i32 : i32, i32
  }
  func.func @transform_1(%arg0: i32) -> (i32, i32) {
    %c0_i32 = arith.constant 0 : i32
    %c0_i32_0 = arith.constant 0 : i32
    %c0_i32_1 = arith.constant 0 : i32
    return %c0_i32, %c0_i32_0 : i32, i32
  }
  func.func @transform_2(%arg0: i32) -> (i32, i32) {
    %c0_i32 = arith.constant 0 : i32
    %c0_i32_0 = arith.constant 0 : i32
    %c0_i32_1 = arith.constant 0 : i32
    return %c0_i32, %c0_i32_0 : i32, i32
  }
  func.func @transform_3(%arg0: i32) -> (i32, i32) {
    %c0_i32 = arith.constant 0 : i32
    %c0_i32_0 = arith.constant 0 : i32
    %c0_i32_1 = arith.constant 0 : i32
    return %c0_i32, %c0_i32_0 : i32, i32
  }
  func.func @transform_4(%arg0: i32) -> (i32, i32) {
    %c0_i32 = arith.constant 0 : i32
    %c0_i32_0 = arith.constant 0 : i32
    %c0_i32_1 = arith.constant 0 : i32
    return %c0_i32, %c0_i32_0 : i32, i32
  }
  func.func @transform_5(%arg0: i32) -> (i32, i32) {
    %c0_i32 = arith.constant 0 : i32
    %c0_i32_0 = arith.constant 0 : i32
    %c0_i32_1 = arith.constant 0 : i32
    return %c0_i32, %c0_i32_0 : i32, i32
  }
  func.func @transform_6(%arg0: i32) -> (i32, i32) {
    %c0_i32 = arith.constant 0 : i32
    %c0_i32_0 = arith.constant 0 : i32
    %c0_i32_1 = arith.constant 0 : i32
    return %c0_i32, %c0_i32_0 : i32, i32
  }
  func.func @transform_7(%arg0: i32) -> (i32, i32) {
    %c0_i32 = arith.constant 0 : i32
    %c0_i32_0 = arith.constant 0 : i32
    %c0_i32_1 = arith.constant 0 : i32
    return %c0_i32, %c0_i32_0 : i32, i32
  }
  func.func @transform_8(%arg0: i32) -> (i32, i32) {
    %c0_i32 = arith.constant 0 : i32
    %c0_i32_0 = arith.constant 0 : i32
    %c0_i32_1 = arith.constant 0 : i32
    return %c0_i32, %c0_i32_0 : i32, i32
  }
  func.func @transform_9(%arg0: i32) -> (i32, i32) {
    %c0_i32 = arith.constant 0 : i32
    %c0_i32_0 = arith.constant 0 : i32
    return %c0_i32, %arg0 : i32, i32
  }
}

</mosaic_0001>

<llo_original>
// kernel: tpu_custom_call.1
$region0: #{tpu_custom_call.1}
  #allocation0 [shape = 'u32[]', space=smem, size = 0x4, offset = 0x4, fixed_abs, tag = 'smem constant byte address 0x4 - core index']
  #allocation1 [shape = 'u32[72,128]{1,0:T(1,128)}', space=vmem, size = 0x9000, scoped, tag = 'internal scratch']
  %s0 = inlined_call_operand.vmem [shape: f32[4,8], index: 0, kind: input, shape index: {}]
  %s1 = inlined_call_operand.vmem [shape: bf16[64,8], index: 1, kind: input, shape index: {}]
  %s2 = inlined_call_operand.vmem [shape: f32[64,1], index: 2, kind: input, shape index: {}]
  %s3 = inlined_call_operand.vmem [shape: bf16[64,64], index: 3, kind: input, shape index: {}]
  %s4 = inlined_call_operand.vmem [shape: f32[64,1], index: 4, kind: input, shape index: {}]
  %s5 = inlined_call_operand.vmem [shape: bf16[16,64], index: 5, kind: input, shape index: {}]
  %s6 = inlined_call_operand.vmem [shape: f32[16,1], index: 6, kind: input, shape index: {}]
  %s7 = inlined_call_operand.vmem [shape: bf16[2,16], index: 7, kind: input, shape index: {}]
  %s8 = inlined_call_operand.vmem [shape: f32[2,1], index: 8, kind: input, shape index: {}]
  %s9 = inlined_call_operand.hbm [shape: f32[2,4], index: 9, kind: output, shape index: {}]
  %s10 = sld [smem:[#allocation0]]
  $region46: #{tpu_custom_call.1} parent=0
    _
  %s12 = ssub.s32 1, %s10
  %s13 = scalar_select 0, %s12, %s10
  $region1: #{tpu_custom_call.1} parent=0
    #allocation2 [shape = 'u8[1024]{0}', space=vmem, size = 0x400, scoped, tag = 'output window, operand 0, single buffered']
    #allocation3 [shape = 's32[1]{0}', space=sflag, size = 0x4, scoped, tag = 'scoped memory for tpu_custom_call.1']
    %14 = vsyncpa [#allocation3], 0
    // Predicated region
    $region2: #{tpu_custom_call.1} parent=1 // pred_check
      _
    $region3: #{tpu_custom_call.1} parent=1 // pred_check_branch
      %16 = sbr.rel (0) target = $region5
    $region4: #{tpu_custom_call.1} parent=1 // pred_region
      _
    $region5: #{tpu_custom_call.1} parent=1 // pred_fallthru
      _
    // Predicated region
    $region6: #{tpu_custom_call.1} parent=1 // pred_check
      _
    $region7: #{tpu_custom_call.1} parent=1 // pred_check_branch
      %18 = sbr.rel (0) target = $region9
    $region8: #{tpu_custom_call.1} parent=1 // pred_region
      _
    $region9: #{tpu_custom_call.1} parent=1 // pred_fallthru
      _
    // Predicated region
    $region10: #{tpu_custom_call.1} parent=1 // pred_check
      _
    $region11: #{tpu_custom_call.1} parent=1 // pred_check_branch
      %20 = sbr.rel (0) target = $region13
    $region12: #{tpu_custom_call.1} parent=1 // pred_region
      _
    $region13: #{tpu_custom_call.1} parent=1 // pred_fallthru
      _
    // Predicated region
    $region14: #{tpu_custom_call.1} parent=1 // pred_check
      _
    $region15: #{tpu_custom_call.1} parent=1 // pred_check_branch
      %22 = sbr.rel (0) target = $region17
    $region16: #{tpu_custom_call.1} parent=1 // pred_region
      _
    $region17: #{tpu_custom_call.1} parent=1 // pred_fallthru
      _
    // Predicated region
    $region18: #{tpu_custom_call.1} parent=1 // pred_check
      _
    $region19: #{tpu_custom_call.1} parent=1 // pred_check_branch
      %24 = sbr.rel (0) target = $region21
    $region20: #{tpu_custom_call.1} parent=1 // pred_region
      _
    $region21: #{tpu_custom_call.1} parent=1 // pred_fallthru
      _
    // Predicated region
    $region22: #{tpu_custom_call.1} parent=1 // pred_check
      _
    $region23: #{tpu_custom_call.1} parent=1 // pred_check_branch
      %26 = sbr.rel (0) target = $region25
    $region24: #{tpu_custom_call.1} parent=1 // pred_region
      _
    $region25: #{tpu_custom_call.1} parent=1 // pred_fallthru
      _
    // Predicated region
    $region26: #{tpu_custom_call.1} parent=1 // pred_check
      _
    $region27: #{tpu_custom_call.1} parent=1 // pred_check_branch
      %28 = sbr.rel (0) target = $region29
    $region28: #{tpu_custom_call.1} parent=1 // pred_region
      _
    $region29: #{tpu_custom_call.1} parent=1 // pred_fallthru
      _
    // Predicated region
    $region30: #{tpu_custom_call.1} parent=1 // pred_check
      _
    $region31: #{tpu_custom_call.1} parent=1 // pred_check_branch
      %30 = sbr.rel (0) target = $region33
    $region32: #{tpu_custom_call.1} parent=1 // pred_region
      _
    $region33: #{tpu_custom_call.1} parent=1 // pred_fallthru
      _
    // Predicated region
    $region34: #{tpu_custom_call.1} parent=1 // pred_check
      _
    $region35: #{tpu_custom_call.1} parent=1 // pred_check_branch
      %32 = sbr.rel (0) target = $region37
    $region36: #{tpu_custom_call.1} parent=1 // pred_region
      _
    $region37: #{tpu_custom_call.1} parent=1 // pred_fallthru
      _
    %v34 = vld [vmem:[%s0] sm:$0xf]
    %v35 = vpack.c.bf16 %v34, %v34
    %v36 = vld [vmem:[%s1] sm:$0xf]
    %v37 = vld [vmem:[%s1 + $0x4] sm:$0xf]
    %v38 = vld [vmem:[%s1 + $0x8] sm:$0xf]
    %v39 = vld [vmem:[%s1 + $0xc] sm:$0xf]
    %v40 = vld [vmem:[%s1 + $0x10] sm:$0xf]
    %v41 = vld [vmem:[%s1 + $0x14] sm:$0xf]
    %v42 = vld [vmem:[%s1 + $0x18] sm:$0xf]
    %v43 = vld [vmem:[%s1 + $0x1c] sm:$0xf]
    %v44 = vld [vmem:[%s2] sm:$0xff]
    %v45 = vld [vmem:[%s2 + $0x8] sm:$0xff]
    %v46 = vld [vmem:[%s2 + $0x10] sm:$0xff]
    %v47 = vld [vmem:[%s2 + $0x18] sm:$0xff]
    %v48 = vld [vmem:[%s2 + $0x20] sm:$0xff]
    %v49 = vld [vmem:[%s2 + $0x28] sm:$0xff]
    %v50 = vld [vmem:[%s2 + $0x30] sm:$0xff]
    %v51 = vld [vmem:[%s2 + $0x38] sm:$0xff]
    %53 = vset.pattern.permute.xlu0 0
    %54 = vperm.xlu0 %53, %v44
    %v55 = vpop.permute.xlu0 %54
    %58 = vset.pattern.permute.xlu0 0
    %59 = vperm.xlu0 %58, %v45
    %v60 = vpop.permute.xlu0 %59
    %63 = vset.pattern.permute.xlu0 0
    %64 = vperm.xlu0 %63, %v46
    %v65 = vpop.permute.xlu0 %64
    %68 = vset.pattern.permute.xlu0 0
    %69 = vperm.xlu0 %68, %v47
    %v70 = vpop.permute.xlu0 %69
    %73 = vset.pattern.permute.xlu0 0
    %74 = vperm.xlu0 %73, %v48
    %v75 = vpop.permute.xlu0 %74
    %78 = vset.pattern.permute.xlu0 0
    %79 = vperm.xlu0 %78, %v49
    %v80 = vpop.permute.xlu0 %79
    %83 = vset.pattern.permute.xlu0 0
    %84 = vperm.xlu0 %83, %v50
    %v85 = vpop.permute.xlu0 %84
    %88 = vset.pattern.permute.xlu0 0
    %89 = vperm.xlu0 %88, %v51
    %v90 = vpop.permute.xlu0 %89
    %v100 = vunpack.c.l.b16 %v36
    %v101 = vunpack.c.l.b16 %v37
    %v102 = vunpack.c.l.b16 %v38
    %v103 = vunpack.c.l.b16 %v39
    %v104 = vunpack.c.l.b16 %v40
    %v105 = vunpack.c.l.b16 %v41
    %v106 = vunpack.c.l.b16 %v42
    %v107 = vunpack.c.l.b16 %v43
    %v108 = vpack.c.b16 %v101, %v100
    %v109 = vpack.c.b16 %v103, %v102
    %v110 = vpack.c.b16 %v105, %v104
    %v111 = vpack.c.b16 %v107, %v106
    %vm112 = vcmask 64512
    %v114 = vsel %vm112, %v108, 0
    %v117 = vsel %vm112, %v109, 0
    %v120 = vsel %vm112, %v110, 0
    %v123 = vsel %vm112, %v111, 0
    %v126 = vsel %vm112, %v35, 0
    %128 = vmatpush.bf16.xpose.msra.mxu0 0
    %129 = vmatpush.bf16.xpose.msra.mxu0 0
    %130 = vmatpush.bf16.xpose.msra.mxu0 0
    %131 = vmatpush.bf16.xpose.msra.mxu0 0
    %132 = vmatpush.bf16.xpose.msra.mxu0 0
    %133 = vmatpush.bf16.xpose.msra.mxu0 0
    %134 = vmatpush.bf16.xpose.msra.mxu0 0
    %135 = vmatpush.bf16.xpose.msra.mxu0 %v126
    %136 = vmatmul.bf16.gmra.mxu0 %v114
    %v137 = vpop.f32.mrf.mxu0
    %v138 = vadd.f32 %v55, %v137
    %v139 = vpop.f32.mrf.mxu0
    %v140 = vadd.f32 %v60, %v139
    %141 = vmatmul.bf16.gmra.mxu0 %v117
    %v142 = vpop.f32.mrf.mxu0
    %v143 = vadd.f32 %v65, %v142
    %v144 = vpop.f32.mrf.mxu0
    %v145 = vadd.f32 %v70, %v144
    %146 = vmatmul.bf16.gmra.mxu0 %v120
    %v147 = vpop.f32.mrf.mxu0
    %v148 = vadd.f32 %v75, %v147
    %v149 = vpop.f32.mrf.mxu0
    %v150 = vadd.f32 %v80, %v149
    %151 = vmatmul.bf16.gmra.mxu0 %v123
    %v152 = vpop.f32.mrf.mxu0
    %v153 = vadd.f32 %v85, %v152
    %v154 = vpop.f32.mrf.mxu0
    %v155 = vadd.f32 %v90, %v154
    %156 = vdwg.mxu0
    %v157 = vmax.f32 %v138, 0.0
    %v158 = vmax.f32 %v140, 0.0
    %v159 = vmax.f32 %v143, 0.0
    %v160 = vmax.f32 %v145, 0.0
    %v161 = vmax.f32 %v148, 0.0
    %v162 = vmax.f32 %v150, 0.0
    %v163 = vmax.f32 %v153, 0.0
    %v164 = vmax.f32 %v155, 0.0
    %v165 = vpack.c.bf16 %v158, %v157
    %v166 = vpack.c.bf16 %v160, %v159
    %v167 = vpack.c.bf16 %v162, %v161
    %v168 = vpack.c.bf16 %v164, %v163
    %v169 = vld [vmem:[%s3] sm:$0xf]
    %v170 = vld [vmem:[%s3 + $0x4] sm:$0xf]
    %v171 = vld [vmem:[%s3 + $0x8] sm:$0xf]
    %v172 = vld [vmem:[%s3 + $0xc] sm:$0xf]
    %v173 = vld [vmem:[%s3 + $0x10] sm:$0xf]
    %v174 = vld [vmem:[%s3 + $0x14] sm:$0xf]
    %v175 = vld [vmem:[%s3 + $0x18] sm:$0xf]
    %v176 = vld [vmem:[%s3 + $0x1c] sm:$0xf]
    %v177 = vld [vmem:[%s4] sm:$0xff]
    %v178 = vld [vmem:[%s4 + $0x8] sm:$0xff]
    %v179 = vld [vmem:[%s4 + $0x10] sm:$0xff]
    %v180 = vld [vmem:[%s4 + $0x18] sm:$0xff]
    %v181 = vld [vmem:[%s4 + $0x20] sm:$0xff]
    %v182 = vld [vmem:[%s4 + $0x28] sm:$0xff]
    %v183 = vld [vmem:[%s4 + $0x30] sm:$0xff]
    %v184 = vld [vmem:[%s4 + $0x38] sm:$0xff]
    %186 = vset.pattern.permute.xlu0 0
    %187 = vperm.xlu0 %186, %v177
    %v188 = vpop.permute.xlu0 %187
    %191 = vset.pattern.permute.xlu0 0
    %192 = vperm.xlu0 %191, %v178
    %v193 = vpop.permute.xlu0 %192
    %196 = vset.pattern.permute.xlu0 0
    %197 = vperm.xlu0 %196, %v179
    %v198 = vpop.permute.xlu0 %197
    %201 = vset.pattern.permute.xlu0 0
    %202 = vperm.xlu0 %201, %v180
    %v203 = vpop.permute.xlu0 %202
    %206 = vset.pattern.permute.xlu0 0
    %207 = vperm.xlu0 %206, %v181
    %v208 = vpop.permute.xlu0 %207
    %211 = vset.pattern.permute.xlu0 0
    %212 = vperm.xlu0 %211, %v182
    %v213 = vpop.permute.xlu0 %212
    %216 = vset.pattern.permute.xlu0 0
    %217 = vperm.xlu0 %216, %v183
    %v218 = vpop.permute.xlu0 %217
    %221 = vset.pattern.permute.xlu0 0
    %222 = vperm.xlu0 %221, %v184
    %v223 = vpop.permute.xlu0 %222
    %v233 = vunpack.c.l.b16 %v169
    %v234 = vunpack.c.l.b16 %v170
    %v235 = vunpack.c.l.b16 %v171
    %v236 = vunpack.c.l.b16 %v172
    %v237 = vunpack.c.l.b16 %v173
    %v238 = vunpack.c.l.b16 %v174
    %v239 = vunpack.c.l.b16 %v175
    %v240 = vunpack.c.l.b16 %v176
    %v241 = vpack.c.b16 %v234, %v233
    %v242 = vpack.c.b16 %v236, %v235
    %v243 = vpack.c.b16 %v238, %v237
    %v244 = vpack.c.b16 %v240, %v239
    %vm245 = vcmask 523264
    %v247 = vsel %vm245, %v241, 0
    %v250 = vsel %vm245, %v242, 0
    %v253 = vsel %vm245, %v243, 0
    %v256 = vsel %vm245, %v244, 0
    %258 = vmatpush.bf16.msra.mxu0 0
    %259 = vmatpush.bf16.msra.mxu0 0
    %260 = vmatpush.bf16.msra.mxu0 0
    %261 = vmatpush.bf16.msra.mxu0 0
    %262 = vmatpush.bf16.msra.mxu0 %v168
    %263 = vmatpush.bf16.msra.mxu0 %v167
    %264 = vmatpush.bf16.msra.mxu0 %v166
    %265 = vmatpush.bf16.msra.mxu0 %v165
    %266 = vmatmul.bf16.gmra.mxu0 %v247
    %v267 = vpop.f32.mrf.mxu0
    %v268 = vadd.f32 %v188, %v267
    %v269 = vpop.f32.mrf.mxu0
    %v270 = vadd.f32 %v193, %v269
    %271 = vmatmul.bf16.gmra.mxu0 %v250
    %v272 = vpop.f32.mrf.mxu0
    %v273 = vadd.f32 %v198, %v272
    %v274 = vpop.f32.mrf.mxu0
    %v275 = vadd.f32 %v203, %v274
    %276 = vmatmul.bf16.gmra.mxu0 %v253
    %v277 = vpop.f32.mrf.mxu0
    %v278 = vadd.f32 %v208, %v277
    %v279 = vpop.f32.mrf.mxu0
    %v280 = vadd.f32 %v213, %v279
    %281 = vmatmul.bf16.gmra.mxu0 %v256
    %v282 = vpop.f32.mrf.mxu0
    %v283 = vadd.f32 %v218, %v282
    %v284 = vpop.f32.mrf.mxu0
    %v285 = vadd.f32 %v223, %v284
    %286 = vdwg.mxu0
    %v287 = vmax.f32 %v268, 0.0
    %v288 = vmax.f32 %v270, 0.0
    %v289 = vmax.f32 %v273, 0.0
    %v290 = vmax.f32 %v275, 0.0
    %v291 = vmax.f32 %v278, 0.0
    %v292 = vmax.f32 %v280, 0.0
    %v293 = vmax.f32 %v283, 0.0
    %v294 = vmax.f32 %v285, 0.0
    %v295 = vpack.c.bf16 %v288, %v287
    %v296 = vpack.c.bf16 %v290, %v289
    %v297 = vpack.c.bf16 %v292, %v291
    %v298 = vpack.c.bf16 %v294, %v293
    %v299 = vld [vmem:[%s5] sm:$0xf]
    %v300 = vld [vmem:[%s5 + $0x4] sm:$0xf]
    %v301 = vld [vmem:[%s6] sm:$0xff]
    %v302 = vld [vmem:[%s6 + $0x8] sm:$0xff]
    %304 = vset.pattern.permute.xlu0 0
    %305 = vperm.xlu0 %304, %v301
    %v306 = vpop.permute.xlu0 %305
    %309 = vset.pattern.permute.xlu0 0
    %310 = vperm.xlu0 %309, %v302
    %v311 = vpop.permute.xlu0 %310
    %v315 = vunpack.c.l.b16 %v299
    %v316 = vunpack.c.l.b16 %v300
    %v317 = vpack.c.b16 %v316, %v315
    %v319 = vsel %vm245, %v317, 0
    %321 = vmatpush.bf16.msra.mxu0 0
    %322 = vmatpush.bf16.msra.mxu0 0
    %323 = vmatpush.bf16.msra.mxu0 0
    %324 = vmatpush.bf16.msra.mxu0 0
    %325 = vmatpush.bf16.msra.mxu0 %v298
    %326 = vmatpush.bf16.msra.mxu0 %v297
    %327 = vmatpush.bf16.msra.mxu0 %v296
    %328 = vmatpush.bf16.msra.mxu0 %v295
    %329 = vmatmul.bf16.gmra.mxu0 %v319
    %v330 = vpop.f32.mrf.mxu0
    %v331 = vadd.f32 %v306, %v330
    %v332 = vpop.f32.mrf.mxu0
    %v333 = vadd.f32 %v311, %v332
    %334 = vdwg.mxu0
    %v335 = vmax.f32 %v331, 0.0
    %v336 = vmax.f32 %v333, 0.0
    %v337 = vpack.c.bf16 %v336, %v335
    %v338 = vld [vmem:[%s7] sm:$0x1]
    %v339 = vld [vmem:[%s8] sm:$0x3]
    %341 = vset.pattern.permute.xlu0 0
    %342 = vperm.xlu0 %341, %v339
    %v343 = vpop.permute.xlu0 %342
    %vm345 = vcmask 130048
    %v347 = vsel %vm345, %v338, 0
    %349 = vmatpush.bf16.msra.mxu0 0
    %350 = vmatpush.bf16.msra.mxu0 0
    %351 = vmatpush.bf16.msra.mxu0 0
    %352 = vmatpush.bf16.msra.mxu0 0
    %353 = vmatpush.bf16.msra.mxu0 0
    %354 = vmatpush.bf16.msra.mxu0 0
    %355 = vmatpush.bf16.msra.mxu0 0
    %356 = vmatpush.bf16.msra.mxu0 %v337
    %357 = vmatmul.bf16.gmra.mxu0 %v347
    %v358 = vpop.f32.mrf.mxu0
    %v359 = vadd.f32 %v343, %v358
    %v360 = vpop.f32.mrf.mxu0
    %361 = vdwg.mxu0
    %vm362 = vcmask 25600
    %363 = vst.msk [vmem:[#allocation2] sm:$0x3] %vm362, %v359
    // Predicated region
    $region38: #{tpu_custom_call.1} parent=1 // pred_check
      _
    $region39: #{tpu_custom_call.1} parent=1 // pred_check_branch
      %365 = sbr.rel (0) target = $region41
    $region40: #{tpu_custom_call.1} parent=1 // pred_region
      %367 = vsyncadd [#allocation3], 0
      %s369 = sshll.u32 [#allocation2], 4
      %s370 = int_to_ptr.vmem [resolvable:$true] %s369
      %s371 = sshll.u32 %s9, 4
      %s372 = int_to_ptr.hbm [resolvable:$true] %s371
      %374 = dma.vmem_to_hbm [thread:$0]  %s370, 32, %s372, [#allocation3]
    $region41: #{tpu_custom_call.1} parent=1 // pred_fallthru
      _
    // Predicated region
    $region42: #{tpu_custom_call.1} parent=1 // pred_check
      _
    $region43: #{tpu_custom_call.1} parent=1 // pred_check_branch
      %376 = sbr.rel (0) target = $region45
    $region44: #{tpu_custom_call.1} parent=1 // pred_region
      %378 = dma.done [#allocation3], 32
    $region45: #{tpu_custom_call.1} parent=1 // pred_fallthru
      _
    %379 = vsyncpa [#allocation3], 1

</llo_original>
